<compile_context>
chip_gen: v5e
topology: v5e:2x2
jax: 0.10.0
libtpu: 0.0.40
codegen_flags: <defaults>
</compile_context>

<pallas_src>
import numpy as np
import jax
import jax.numpy as jnp
from jax.experimental import pallas as pl
from jax.experimental.pallas import tpu as pltpu


def _round_up(x, m):
    return ((x + m - 1) // m) * m


# ----------------------------------------------------------------------------
# Weight packing: one stacked weight + one selection matrix.
# ----------------------------------------------------------------------------
def _pack_params(params, n_models, d_out, d_in, dtype=jnp.float32):
    """Packs all 2N+1 one-layer score nets for the fully fused matmul.

    Column layout (slot-major): [global, lik_0..lik_{N-1}, pri_0..pri_{N-1}, 0-pad]
    Row layout (matches the [y | x_flat | sigma | 1] input slab):
      rows 0..D-1         y-side weights of every slot
      rows D..D+N*DIN-1   block-diagonal x-side weights (likelihood slots only)
      row  D+N*DIN        sigma-conditioning row
      row  D+N*DIN+1      bias row
    """
    (wg_y, wg_s, bg, wl_y, wl_x, wl_s, bl, wp_y, wp_s, bp) = params
    N, D, DIN = n_models, d_out, d_in
    K = 2 * N + 1
    KD = K * D
    KD_pad = _round_up(KD, 128)          # lane-dense packed width (224 -> 256)
    F = D + N * DIN + 2

    # y-side rows: (D, K*D), column index = slot*D + d.
    wy = jnp.concatenate([wg_y[None], wl_y, wp_y], axis=0)            # (K, D, D)
    wy = jnp.transpose(wy, (1, 0, 2)).reshape(D, KD)

    # x-side rows: block-diag into likelihood slots (slots 1..N) only.
    wx_rows = []
    for i in range(N):
        left = jnp.zeros((DIN, (1 + i) * D), dtype)
        right = jnp.zeros((DIN, (K - 2 - i) * D), dtype)
        wx_rows.append(jnp.concatenate([left, wl_x[i].astype(dtype), right], axis=1))
    wx = jnp.concatenate(wx_rows, axis=0)                             # (N*DIN, K*D)

    # sigma row / bias row: (1, K*D), slot-major flatten.
    ws = jnp.concatenate([wg_s[None], wl_s, wp_s], axis=0).reshape(1, KD)
    b = jnp.concatenate([bg[None], bl, bp], axis=0).reshape(1, KD)

    w = jnp.concatenate([wy.astype(dtype), wx, ws.astype(dtype), b.astype(dtype)],
                        axis=0)                                       # (F, K*D)
    w = jnp.concatenate([w, jnp.zeros((F, KD_pad - KD), dtype)], axis=1)  # (F, KD_pad)

    # FSDM combination: posterior = h @ sel,  sel = blockdiag(coeff_k * I_D),
    # zero rows for the lane-padding columns.
    coeff = jnp.concatenate([jnp.ones((1,), dtype),
                             jnp.full((N,), 1.0 / N, dtype),
                             jnp.full((N,), -1.0 / N, dtype)])        # (K,)
    sel = (coeff[:, None, None] * jnp.eye(D, dtype=dtype)[None]).reshape(KD, D)
    sel = jnp.concatenate([sel, jnp.zeros((KD_pad - KD, D), dtype)], axis=0)

    return w, sel, KD_pad, F


# ----------------------------------------------------------------------------
# Wrapper: one lane-dense fused pallas_call over a batch-tiled grid.
# ----------------------------------------------------------------------------
def fsdm_pallas(y, sigma, x_stack, params, *, batch_tile=1024,
                weight_dtype=jnp.float32):
    B, D = y.shape
    N, _, DIN = x_stack.shape

    w_packed, sel, KD_pad, F = _pack_params(params, N, D, DIN, dtype=weight_dtype)

    # Single input slab: [y | x_flat | sigma | 1]  -> (B, F)
    x_flat = jnp.transpose(x_stack, (1, 0, 2)).reshape(B, N * DIN)
    inp = jnp.concatenate([y.astype(jnp.float32),
                           x_flat.astype(jnp.float32),
                           sigma.astype(jnp.float32),
                           jnp.ones((B, 1), jnp.float32)], axis=1)

    # Batch tiling: multiple of 8 (or the whole batch); pad + slice, no assert.
    if B <= batch_tile:
        tb = B
    else:
        tb = max(8, (batch_tile // 8) * 8)
    B_pad = _round_up(B, tb)
    if B_pad != B:
        pad = B_pad - B
        pad_rows = jnp.concatenate(
            [jnp.ones((pad, D), jnp.float32),           # benign y
             jnp.zeros((pad, N * DIN), jnp.float32),    # x = 0
             jnp.ones((pad, 2), jnp.float32)], axis=1)  # sigma = 1, ones = 1
        inp = jnp.concatenate([inp, pad_rows], axis=0)
    if weight_dtype != jnp.float32:
        inp = inp.astype(weight_dtype)

    grid = (B_pad // tb,)
    sig_off = D + N * DIN
    vm = pltpu.MemorySpace.VMEM

    def kernel(inp_ref, w_ref, sel_ref, out_ref):
        inp_t = inp_ref[...]                                           # (TB, F)
        # ONE MXU pass: all 2N+1 score nets, x-side blocks, sigma conditioning
        # and bias folded into a single lane-dense matmul; f32 accumulation.
        acc = jnp.dot(inp_t, w_ref[...], preferred_element_type=jnp.float32)
        h = jnp.tanh(acc)                                              # (TB, KD_pad) EUP
        # FSDM combination (global + 1/N*(sum lik - sum prior)) as a
        # scaled-identity selection matmul — MXU has slack, stays lane-dense.
        post = jnp.dot(h.astype(weight_dtype), sel_ref[...],
                       preferred_element_type=jnp.float32)             # (TB, D)
        yv = inp_t[:, :D].astype(jnp.float32)
        sig = inp_t[:, sig_off:sig_off + 1].astype(jnp.float32)
        sig2 = sig * sig
        end = post * sig2 + yv
        # TODO(synk): no guard against a near-zero row sum — matches the
        # reference / PyTorch module, which has the same failure mode.
        end = end * pl.reciprocal(jnp.sum(end, axis=1, keepdims=True), approx=False)
        out_ref[...] = ((end - yv) * pl.reciprocal(sig2, approx=False)).astype(out_ref.dtype)

    # Explicit VMEM budget: resident packed weights (double-buffer worst case)
    # + pipelined row tiles, clamped below v7x's 64 MiB physical VMEM.
    isz = jnp.dtype(weight_dtype).itemsize
    need = (2 * (w_packed.size + sel.size) * isz
            + 2 * tb * (F + D + KD_pad) * 4 + (4 << 20))
    vmem_limit = int(min(max(need, 32 << 20), 60 << 20))

    out = pl.pallas_call(
        kernel,
        out_shape=jax.ShapeDtypeStruct((B_pad, D), jnp.float32),
        grid=grid,
        in_specs=[
            pl.BlockSpec((tb, F), lambda i: (i, 0), memory_space=vm),      # input slab
            # Constant index_map -> weights stay VMEM-resident across steps.
            # (For very large D/N on v7x, add pipeline_mode=pl.Buffered(1) or a
            #  column grid axis over KD_pad.)
            pl.BlockSpec((F, KD_pad), lambda i: (0, 0), memory_space=vm),  # stacked W
            pl.BlockSpec((KD_pad, D), lambda i: (0, 0), memory_space=vm),  # selection
        ],
        out_specs=pl.BlockSpec((tb, D), lambda i: (i, 0), memory_space=vm),
        compiler_params=pltpu.CompilerParams(
            dimension_semantics=("parallel",),
            vmem_limit_bytes=vmem_limit),
    )(inp, w_packed, sel)
    return out[:B]


# ----------------------------------------------------------------------------
# Pure-JAX reference (mirrors the PyTorch forward semantics exactly)
# ----------------------------------------------------------------------------
def fsdm_reference(y, sigma, x_stack, params):
    (wg_y, wg_s, bg, wl_y, wl_x, wl_s, bl, wp_y, wp_s, bp) = params
    n = x_stack.shape[0]
    hp = jax.lax.Precision.HIGHEST

    def score(wy, ws, b, x=None, wx=None):
        acc = jnp.dot(y, wy, precision=hp)
        if x is not None:
            acc = acc + jnp.dot(x, wx, precision=hp)
        return jnp.tanh(acc + sigma * ws + b)

    global_prior = score(wg_y, wg_s, bg)
    likelihood = sum(score(wl_y[i], wl_s[i], bl[i], x=x_stack[i], wx=wl_x[i])
                     for i in range(n))
    prior = sum(score(wp_y[i], wp_s[i], bp[i]) for i in range(n))
    posterior = global_prior + (1.0 / n) * (likelihood - prior)
    end = posterior * sigma ** 2 + y
    end = end / end.sum(axis=1, keepdims=True)
    return (end - y) / sigma ** 2


# ----------------------------------------------------------------------------
if __name__ == "__main__":
    B, D, DIN, N = 8, 32, 16, 3          # batch, output_dim, input_dim, #models

    key = jax.random.PRNGKey(0)
    ks = jax.random.split(key, 16)

    # Keep y positive and sigma bounded away from 0 so the row-normalization
    # denominator is well conditioned (same fragility as the reference).
    y = jnp.abs(jax.random.normal(ks[0], (B, D), jnp.float32)) + 0.5
    sigma = jax.random.uniform(ks[1], (B, 1), jnp.float32, 0.3, 1.0)
    x_stack = jax.random.normal(ks[2], (N, B, DIN), jnp.float32)

    s = 0.1
    params = (
        s * jax.random.normal(ks[3], (D, D), jnp.float32),      # wg_y
        s * jax.random.normal(ks[4], (1, D), jnp.float32),      # wg_s
        s * jax.random.normal(ks[5], (1, D), jnp.float32),      # bg
        s * jax.random.normal(ks[6], (N, D, D), jnp.float32),   # wl_y
        s * jax.random.normal(ks[7], (N, DIN, D), jnp.float32), # wl_x
        s * jax.random.normal(ks[8], (N, 1, D), jnp.float32),   # wl_s
        s * jax.random.normal(ks[9], (N, 1, D), jnp.float32),   # bl
        s * jax.random.normal(ks[10], (N, D, D), jnp.float32),  # wp_y
        s * jax.random.normal(ks[11], (N, 1, D), jnp.float32),  # wp_s
        s * jax.random.normal(ks[12], (N, 1, D), jnp.float32),  # bp
    )

    out = jax.block_until_ready(fsdm_pallas(y, sigma, x_stack, params))
    ref = jax.block_until_ready(fsdm_reference(y, sigma, x_stack, params))

    assert out.shape == (B, D)
    np.testing.assert_allclose(np.asarray(out), np.asarray(ref),
                               rtol=1e-4, atol=1e-4)
    print("KERNEL_OK")
</pallas_src>

<mosaic_0001>
module attributes {stable_mosaic.version = 11 : i64} {
  func.func @kernel(%arg0: i32, %arg1: memref<8x82xf32, #tpu.memory_space<vmem>>, %arg2: memref<82x256xf32, #tpu.memory_space<vmem>>, %arg3: memref<256x32xf32, #tpu.memory_space<vmem>>, %arg4: memref<8x32xf32, #tpu.memory_space<vmem>>) attributes {dimension_semantics = [#tpu.dimension_semantics<parallel>], iteration_bounds = array<i64: 1>, scalar_prefetch = 0 : i64, scratch_operands = 0 : i64, tpu.core_type = #tpu.core_type<tc>, window_params = [{transform_indices = @transform_0, window_bounds = array<i64: 8, 82>}, {pipeline_mode = #tpu.pipeline_mode<synchronous>, transform_indices = @transform_1, window_bounds = array<i64: 82, 256>}, {pipeline_mode = #tpu.pipeline_mode<synchronous>, transform_indices = @transform_2, window_bounds = array<i64: 256, 32>}, {transform_indices = @transform_3, window_bounds = array<i64: 8, 32>}]} {
    %c0 = arith.constant 0 : index
    %c0_0 = arith.constant 0 : index
    %0 = vector.load %arg1[%c0, %c0_0] : memref<8x82xf32, #tpu.memory_space<vmem>>, vector<8x82xf32>
    %c0_1 = arith.constant 0 : index
    %c0_2 = arith.constant 0 : index
    %1 = vector.load %arg2[%c0_1, %c0_2] : memref<82x256xf32, #tpu.memory_space<vmem>>, vector<82x256xf32>
    %cst = arith.constant dense<0.000000e+00> : vector<8x256xf32>
    %2 = tpu.matmul %0, %1, %cst {dimension_numbers = #tpu.dot_dimension_numbers<[1], [0], [0], [1], [0, 0, 1, 1], [], []>} : vector<8x82xf32>, vector<82x256xf32>, vector<8x256xf32> -> vector<8x256xf32>
    %3 = math.tanh %2 : vector<8x256xf32>
    %c0_3 = arith.constant 0 : index
    %c0_4 = arith.constant 0 : index
    %4 = vector.load %arg3[%c0_3, %c0_4] : memref<256x32xf32, #tpu.memory_space<vmem>>, vector<256x32xf32>
    %cst_5 = arith.constant dense<0.000000e+00> : vector<8x32xf32>
    %5 = tpu.matmul %3, %4, %cst_5 {dimension_numbers = #tpu.dot_dimension_numbers<[1], [0], [0], [1], [0, 0, 1, 1], [], []>} : vector<8x256xf32>, vector<256x32xf32>, vector<8x32xf32> -> vector<8x32xf32>
    %6 = vector.extract_strided_slice %0 {offsets = [0, 0], sizes = [8, 32], strides = [1, 1]} : vector<8x82xf32> to vector<8x32xf32>
    %7 = vector.extract_strided_slice %0 {offsets = [0, 80], sizes = [8, 1], strides = [1, 1]} : vector<8x82xf32> to vector<8x1xf32>
    %8 = arith.mulf %7, %7 : vector<8x1xf32>
    %9 = vector.broadcast %8 : vector<8x1xf32> to vector<8x32xf32>
    %10 = arith.mulf %5, %9 : vector<8x32xf32>
    %11 = arith.addf %10, %6 : vector<8x32xf32>
    %cst_6 = arith.constant dense<0.000000e+00> : vector<8xf32>
    %12 = vector.multi_reduction <add>, %11, %cst_6 [1] : vector<8x32xf32> to vector<8xf32>
    %13 = vector.shape_cast %12 : vector<8xf32> to vector<8x1xf32>
    %14 = tpu.reciprocal %13 : vector<8x1xf32> -> vector<8x1xf32>
    %15 = vector.broadcast %14 : vector<8x1xf32> to vector<8x32xf32>
    %16 = arith.mulf %11, %15 : vector<8x32xf32>
    %17 = arith.subf %16, %6 : vector<8x32xf32>
    %18 = tpu.reciprocal %8 : vector<8x1xf32> -> vector<8x1xf32>
    %19 = vector.broadcast %18 : vector<8x1xf32> to vector<8x32xf32>
    %20 = arith.mulf %17, %19 : vector<8x32xf32>
    %c0_7 = arith.constant 0 : index
    %c0_8 = arith.constant 0 : index
    %21 = vector.load %arg4[%c0_7, %c0_8] : memref<8x32xf32, #tpu.memory_space<vmem>>, vector<8x32xf32>
    tpu.vector_store %arg4[%c0_7, %c0_8], %20 {strides = array<i32>} : memref<8x32xf32, #tpu.memory_space<vmem>>, vector<8x32xf32>,
    return
  }
  func.func @transform_0(%arg0: i32) -> (i32, i32) {
    %c0_i32 = arith.constant 0 : i32
    %c0_i32_0 = arith.constant 0 : i32
    return %arg0, %c0_i32 : i32, i32
  }
  func.func @transform_1(%arg0: i32) -> (i32, i32) {
    %c0_i32 = arith.constant 0 : i32
    %c0_i32_0 = arith.constant 0 : i32
    %c0_i32_1 = arith.constant 0 : i32
    return %c0_i32, %c0_i32_0 : i32, i32
  }
  func.func @transform_2(%arg0: i32) -> (i32, i32) {
    %c0_i32 = arith.constant 0 : i32
    %c0_i32_0 = arith.constant 0 : i32
    %c0_i32_1 = arith.constant 0 : i32
    return %c0_i32, %c0_i32_0 : i32, i32
  }
  func.func @transform_3(%arg0: i32) -> (i32, i32) {
    %c0_i32 = arith.constant 0 : i32
    %c0_i32_0 = arith.constant 0 : i32
    return %arg0, %c0_i32 : i32, i32
  }
}

</mosaic_0001>

<llo_original>
// kernel: tpu_custom_call.1
$region0: #{tpu_custom_call.1}
  #allocation0 [shape = 'u32[]', space=smem, size = 0x4, offset = 0x4, fixed_abs, tag = 'smem constant byte address 0x4 - core index']
  #allocation1 [shape = 'u32[72,128]{1,0:T(1,128)}', space=vmem, size = 0x9000, scoped, tag = 'internal scratch']
  %s0 = inlined_call_operand.vmem [shape: f32[8,82], index: 0, kind: input, shape index: {}]
  %s1 = inlined_call_operand.vmem [shape: f32[82,256], index: 1, kind: input, shape index: {}]
  %s2 = inlined_call_operand.vmem [shape: f32[256,32], index: 2, kind: input, shape index: {}]
  %s3 = inlined_call_operand.hbm [shape: f32[8,32], index: 3, kind: output, shape index: {}]
  %s4 = sld [smem:[#allocation0]]
  $region22: #{tpu_custom_call.1} parent=0
    _
  %s6 = ssub.s32 1, %s4
  %s7 = scalar_select 0, %s6, %s4
  $region1: #{tpu_custom_call.1} parent=0
    #allocation2 [shape = 'u8[4096]{0}', space=vmem, size = 0x1000, scoped, tag = 'output window, operand 0, single buffered']
    #allocation3 [shape = 's32[1]{0}', space=sflag, size = 0x4, scoped, tag = 'scoped memory for tpu_custom_call.1']
    %8 = vsyncpa [#allocation3], 0
    // Predicated region
    $region2: #{tpu_custom_call.1} parent=1 // pred_check
      _
    $region3: #{tpu_custom_call.1} parent=1 // pred_check_branch
      %10 = sbr.rel (0) target = $region5
    $region4: #{tpu_custom_call.1} parent=1 // pred_region
      _
    $region5: #{tpu_custom_call.1} parent=1 // pred_fallthru
      _
    // Predicated region
    $region6: #{tpu_custom_call.1} parent=1 // pred_check
      _
    $region7: #{tpu_custom_call.1} parent=1 // pred_check_branch
      %12 = sbr.rel (0) target = $region9
    $region8: #{tpu_custom_call.1} parent=1 // pred_region
      _
    $region9: #{tpu_custom_call.1} parent=1 // pred_fallthru
      _
    // Predicated region
    $region10: #{tpu_custom_call.1} parent=1 // pred_check
      _
    $region11: #{tpu_custom_call.1} parent=1 // pred_check_branch
      %14 = sbr.rel (0) target = $region13
    $region12: #{tpu_custom_call.1} parent=1 // pred_region
      _
    $region13: #{tpu_custom_call.1} parent=1 // pred_fallthru
      _
    %v15 = vld [vmem:[%s0] sm:$0xff]
    %v16 = vld [vmem:[%s1] sm:$0xff]
    %v17 = vld [vmem:[%s1 + $0x8] sm:$0xff]
    %v18 = vld [vmem:[%s1 + $0x10] sm:$0xff]
    %v19 = vld [vmem:[%s1 + $0x18] sm:$0xff]
    %v20 = vld [vmem:[%s1 + $0x20] sm:$0xff]
    %v21 = vld [vmem:[%s1 + $0x28] sm:$0xff]
    %v22 = vld [vmem:[%s1 + $0x30] sm:$0xff]
    %v23 = vld [vmem:[%s1 + $0x38] sm:$0xff]
    %v24 = vld [vmem:[%s1 + $0x40] sm:$0xff]
    %v25 = vld [vmem:[%s1 + $0x48] sm:$0xff]
    %v26 = vld [vmem:[%s1 + $0x50] sm:$0xff]
    %v27 = vld [vmem:[%s1 + $0x58] sm:$0xff]
    %v28 = vld [vmem:[%s1 + $0x60] sm:$0xff]
    %v29 = vld [vmem:[%s1 + $0x68] sm:$0xff]
    %v30 = vld [vmem:[%s1 + $0x70] sm:$0xff]
    %v31 = vld [vmem:[%s1 + $0x78] sm:$0xff]
    %v32 = vld [vmem:[%s1 + $0x80] sm:$0xff]
    %v33 = vld [vmem:[%s1 + $0x88] sm:$0xff]
    %v34 = vld [vmem:[%s1 + $0x90] sm:$0xff]
    %v35 = vld [vmem:[%s1 + $0x98] sm:$0xff]
    %v36 = vld [vmem:[%s1 + $0xa0] sm:$0x3]
    %v37 = vld [vmem:[%s1 + $0xa8] sm:$0x3]
    %vm38 = vcmask 670720
    %v40 = vsel %vm38, %v15, 0
    %vm42 = vcmask 1041408
    %v44 = vsel %vm42, %v36, 0
    %v47 = vsel %vm42, %v37, 0
    %49 = vmatpush.msra.mxu0 0.0
    %50 = vmatpush.msra.mxu0 0.0
    %51 = vmatpush.msra.mxu0 0.0
    %52 = vmatpush.msra.mxu0 0.0
    %53 = vmatpush.msra.mxu0 0.0
    %54 = vmatpush.msra.mxu0 %v44
    %55 = vmatpush.msra.mxu0 %v34
    %56 = vmatpush.msra.mxu0 %v32
    %57 = vmatpush.msra.mxu0 %v30
    %58 = vmatpush.msra.mxu0 %v28
    %59 = vmatpush.msra.mxu0 %v26
    %60 = vmatpush.msra.mxu0 %v24
    %61 = vmatpush.msra.mxu0 %v22
    %62 = vmatpush.msra.mxu0 %v20
    %63 = vmatpush.msra.mxu0 %v18
    %64 = vmatpush.msra.mxu0 %v16
    %65 = vmatmul.f32.gmra.mxu0 %v40
    %v66 = vpop.f32.mrf.mxu0
    %v67 = vadd.f32 0.0, %v66
    %68 = vdwg.mxu0
    %69 = vmatpush.msra.mxu0 0.0
    %70 = vmatpush.msra.mxu0 0.0
    %71 = vmatpush.msra.mxu0 0.0
    %72 = vmatpush.msra.mxu0 0.0
    %73 = vmatpush.msra.mxu0 0.0
    %74 = vmatpush.msra.mxu0 %v47
    %75 = vmatpush.msra.mxu0 %v35
    %76 = vmatpush.msra.mxu0 %v33
    %77 = vmatpush.msra.mxu0 %v31
    %78 = vmatpush.msra.mxu0 %v29
    %79 = vmatpush.msra.mxu0 %v27
    %80 = vmatpush.msra.mxu0 %v25
    %81 = vmatpush.msra.mxu0 %v23
    %82 = vmatpush.msra.mxu0 %v21
    %83 = vmatpush.msra.mxu0 %v19
    %84 = vmatpush.msra.mxu0 %v17
    %85 = vmatmul.f32.gmra.mxu0 %v40
    %v86 = vpop.f32.mrf.mxu0
    %v87 = vadd.f32 0.0, %v86
    %88 = vdwg.mxu0
    %v89 = vtanh.pop %v67
    %v90 = vtanh.pop %v87
    %v91 = vld [vmem:[%s2] sm:$0xff]
    %v92 = vld [vmem:[%s2 + $0x8] sm:$0xff]
    %v93 = vld [vmem:[%s2 + $0x10] sm:$0xff]
    %v94 = vld [vmem:[%s2 + $0x18] sm:$0xff]
    %v95 = vld [vmem:[%s2 + $0x20] sm:$0xff]
    %v96 = vld [vmem:[%s2 + $0x28] sm:$0xff]
    %v97 = vld [vmem:[%s2 + $0x30] sm:$0xff]
    %v98 = vld [vmem:[%s2 + $0x38] sm:$0xff]
    %v99 = vld [vmem:[%s2 + $0x40] sm:$0xff]
    %v100 = vld [vmem:[%s2 + $0x48] sm:$0xff]
    %v101 = vld [vmem:[%s2 + $0x50] sm:$0xff]
    %v102 = vld [vmem:[%s2 + $0x58] sm:$0xff]
    %v103 = vld [vmem:[%s2 + $0x60] sm:$0xff]
    %v104 = vld [vmem:[%s2 + $0x68] sm:$0xff]
    %v105 = vld [vmem:[%s2 + $0x70] sm:$0xff]
    %v106 = vld [vmem:[%s2 + $0x78] sm:$0xff]
    %v107 = vld [vmem:[%s2 + $0x80] sm:$0xff]
    %v108 = vld [vmem:[%s2 + $0x88] sm:$0xff]
    %v109 = vld [vmem:[%s2 + $0x90] sm:$0xff]
    %v110 = vld [vmem:[%s2 + $0x98] sm:$0xff]
    %v111 = vld [vmem:[%s2 + $0xa0] sm:$0xff]
    %v112 = vld [vmem:[%s2 + $0xa8] sm:$0xff]
    %v113 = vld [vmem:[%s2 + $0xb0] sm:$0xff]
    %v114 = vld [vmem:[%s2 + $0xb8] sm:$0xff]
    %v115 = vld [vmem:[%s2 + $0xc0] sm:$0xff]
    %v116 = vld [vmem:[%s2 + $0xc8] sm:$0xff]
    %v117 = vld [vmem:[%s2 + $0xd0] sm:$0xff]
    %v118 = vld [vmem:[%s2 + $0xd8] sm:$0xff]
    %v119 = vld [vmem:[%s2 + $0xe0] sm:$0xff]
    %v120 = vld [vmem:[%s2 + $0xe8] sm:$0xff]
    %v121 = vld [vmem:[%s2 + $0xf0] sm:$0xff]
    %v122 = vld [vmem:[%s2 + $0xf8] sm:$0xff]
    %123 = vmatpush.msra.mxu0 %v106
    %124 = vmatpush.msra.mxu0 %v105
    %125 = vmatpush.msra.mxu0 %v104
    %126 = vmatpush.msra.mxu0 %v103
    %127 = vmatpush.msra.mxu0 %v102
    %128 = vmatpush.msra.mxu0 %v101
    %129 = vmatpush.msra.mxu0 %v100
    %130 = vmatpush.msra.mxu0 %v99
    %131 = vmatpush.msra.mxu0 %v98
    %132 = vmatpush.msra.mxu0 %v97
    %133 = vmatpush.msra.mxu0 %v96
    %134 = vmatpush.msra.mxu0 %v95
    %135 = vmatpush.msra.mxu0 %v94
    %136 = vmatpush.msra.mxu0 %v93
    %137 = vmatpush.msra.mxu0 %v92
    %138 = vmatpush.msra.mxu0 %v91
    %139 = vmatmul.f32.gmra.mxu0 %v89
    %v140 = vpop.f32.mrf.mxu0
    %v141 = vadd.f32 0.0, %v140
    %142 = vdwg.mxu0
    %143 = vmatpush.msra.mxu0 %v122
    %144 = vmatpush.msra.mxu0 %v121
    %145 = vmatpush.msra.mxu0 %v120
    %146 = vmatpush.msra.mxu0 %v119
    %147 = vmatpush.msra.mxu0 %v118
    %148 = vmatpush.msra.mxu0 %v117
    %149 = vmatpush.msra.mxu0 %v116
    %150 = vmatpush.msra.mxu0 %v115
    %151 = vmatpush.msra.mxu0 %v114
    %152 = vmatpush.msra.mxu0 %v113
    %153 = vmatpush.msra.mxu0 %v112
    %154 = vmatpush.msra.mxu0 %v111
    %155 = vmatpush.msra.mxu0 %v110
    %156 = vmatpush.msra.mxu0 %v109
    %157 = vmatpush.msra.mxu0 %v108
    %158 = vmatpush.msra.mxu0 %v107
    %159 = vmatmul.f32.gmra.mxu0 %v90
    %v160 = vpop.f32.mrf.mxu0
    %v161 = vadd.f32 %v141, %v160
    %162 = vdwg.mxu0
    %v163 = vmul.f32 %v15, %v15
    %165 = vset.pattern.permute.xlu0 80
    %166 = vperm.xlu0 %165, %v163
    %v167 = vpop.permute.xlu0 %166
    %v169 = vmul.f32 %v161, %v167
    %v170 = vadd.f32 %v169, %v15
    %vm171 = vcmask 261120
    %v172 = vsel %vm171, %v170, 0.0
    %173 = vadd.xlane.f32.xlu0 %v172
    %v174 = vpop.xlane.xlu0 %173
    %v175 = vrcp.pop %v174
    %v176 = vmul.f32 %v174, %v175
    %v177 = vsub.f32 1.0, %v176
    %v178 = vmul.f32 %v175, %v177
    %v179 = vadd.f32 %v175, %v178
    %vm180 = vweird.f32 %v174
    %vm181 = vweird.f32 %v175
    %vm182 = vmor %vm180, %vm181
    %v183 = vsel %vm182, %v175, %v179
    %v184 = vand.u32 2147483647, %v174
    %vm185 = vcmp.eq.f32.partialorder %v184, 8.507059e+37
    %v186 = vand.u32 %v174, 2147483648
    %v187 = vor.u32 1.1754944e-38, %v186
    %v188 = vsel %vm185, %v187, %v183
    %v189 = vmul.f32 %v170, %v188
    %v190 = vsub.f32 %v189, %v15
    %v191 = vrcp.pop %v163
    %v192 = vmul.f32 %v163, %v191
    %v193 = vsub.f32 1.0, %v192
    %v194 = vmul.f32 %v191, %v193
    %v195 = vadd.f32 %v191, %v194
    %vm196 = vweird.f32 %v163
    %vm197 = vweird.f32 %v191
    %vm198 = vmor %vm196, %vm197
    %v199 = vsel %vm198, %v191, %v195
    %v200 = vand.u32 2147483647, %v163
    %vm201 = vcmp.eq.f32.partialorder %v200, 8.507059e+37
    %v202 = vand.u32 %v163, 2147483648
    %v203 = vor.u32 1.1754944e-38, %v202
    %v204 = vsel %vm201, %v203, %v199
    %206 = vset.pattern.permute.xlu0 80
    %207 = vperm.xlu0 %206, %v204
    %v208 = vpop.permute.xlu0 %207
    %v210 = vmul.f32 %v190, %v208
    %211 = vst.msk [vmem:[#allocation2] sm:$0xff] %vm171, %v210
    // Predicated region
    $region14: #{tpu_custom_call.1} parent=1 // pred_check
      _
    $region15: #{tpu_custom_call.1} parent=1 // pred_check_branch
      %213 = sbr.rel (0) target = $region17
    $region16: #{tpu_custom_call.1} parent=1 // pred_region
      %215 = vsyncadd [#allocation3], 0
      %s217 = sshll.u32 [#allocation2], 4
      %s218 = int_to_ptr.vmem [resolvable:$true] %s217
      %s219 = sshll.u32 %s3, 4
      %s220 = int_to_ptr.hbm [resolvable:$true] %s219
      %222 = dma.vmem_to_hbm [thread:$0]  %s218, 128, %s220, [#allocation3]
    $region17: #{tpu_custom_call.1} parent=1 // pred_fallthru
      _
    // Predicated region
    $region18: #{tpu_custom_call.1} parent=1 // pred_check
      _
    $region19: #{tpu_custom_call.1} parent=1 // pred_check_branch
      %224 = sbr.rel (0) target = $region21
    $region20: #{tpu_custom_call.1} parent=1 // pred_region
      %226 = dma.done [#allocation3], 128
    $region21: #{tpu_custom_call.1} parent=1 // pred_fallthru
      _
    %227 = vsyncpa [#allocation3], 1

</llo_original>
